<compile_context>
chip_gen: v5e
topology: v5e:2x2
jax: 0.10.0
libtpu: 0.0.40
codegen_flags: <defaults>
</compile_context>

<pallas_src>
import functools

import jax
import jax.numpy as jnp
from jax.experimental import pallas as pl
from jax.experimental.pallas import tpu as pltpu


def _round_up(x, m):
    return ((x + m - 1) // m) * m


def _vdn_mixer_kernel(q_ref, w_ref, o_ref):
    # q_ref: (TILE_S, A*128)  dense slab, natural interleaved layout
    # w_ref: (A*128, 128)     selection * weight matrix (resident across steps)
    # o_ref: (TILE_S, 128)    lane- and sublane-dense output slab
    o_ref[...] = jnp.dot(
        q_ref[...], w_ref[...], preferred_element_type=jnp.float32
    ).astype(o_ref.dtype)


def _choose_tile_s(S, max_rows):
    """Pick the slab tile (second-to-last block dim), in units of 128-row slabs."""
    max_tile = max(8, (max_rows // 128) // 8 * 8)      # multiple of 8 sublanes
    if S <= max_tile:
        if S >= 16:
            # Split into two parallel steps so v7x can use both TensorCores.
            return _round_up(pl.cdiv(S, 2), 8)
        return S                                       # single (full-dim) block
    return max_tile


@functools.partial(jax.jit, static_argnames=("tile_rows",))
def vdn_mixer_forward(q_i, state, weight, *, tile_rows=262144):
    """VDNMixer.forward.

    q_i:    (T, B, num_agents) float32
    state:  unused (exactly as in the PyTorch module)
    weight: (1, num_agents) float32 -- nn.Linear(num_agents, 1, bias=False).weight

    Returns (T, B, 1, 1), matching mixer(q_i.view(-1, B, A)).unsqueeze(-1).
    """
    del state
    T, B, A = q_i.shape
    M = T * B
    dtype = q_i.dtype
    itemsize = jnp.dtype(dtype).itemsize

    # Natural layout, free (row-major) views only -- no transpose pass.
    q2 = q_i.reshape(M, A)
    m_pad = _round_up(M, 128)
    if m_pad != M:
        # Only for ragged M (T*B not a multiple of 128); zero rows are sliced
        # off below and contribute w*0.
        q2 = jnp.pad(q2, ((0, m_pad - M), (0, 0)))
    S = m_pad // 128
    q_slabs = q2.reshape(S, 128 * A)   # slab s = rows 128s..128s+127, agents interleaved

    # W_sel[j*A + a, jj] = w[a] * (j == jj): one matmul scales by w, reduces over
    # agents and de-interleaves, producing a dense (TILE_S, 128) output slab.
    w = weight.reshape(A).astype(dtype)
    w_sel = (jnp.eye(128, dtype=dtype)[:, None, :] * w[None, :, None]).reshape(128 * A, 128)

    # Cap the per-step input block at ~4 MiB so double-buffered VMEM stays well
    # inside v5e's 16 MiB default scoped limit (and v7x's 64 MiB physical VMEM).
    max_rows = max(128, min(tile_rows, (4 * 1024 * 1024) // (A * itemsize)))
    tile_s = _choose_tile_s(S, max_rows)
    grid = (pl.cdiv(S, tile_s),)

    out = pl.pallas_call(
        _vdn_mixer_kernel,
        out_shape=jax.ShapeDtypeStruct((S, 128), dtype),
        grid=grid,
        in_specs=[
            pl.BlockSpec((tile_s, 128 * A), lambda i: (i, 0)),
            # Constant block index: fetched once, stays resident in VMEM.
            pl.BlockSpec((128 * A, 128), lambda i: (0, 0)),
        ],
        out_specs=pl.BlockSpec((tile_s, 128), lambda i: (i, 0)),
        compiler_params=pltpu.CompilerParams(
            # Independent row tiles: shardable across both v7x TensorCores,
            # free on single-TC v5e/v6e.
            dimension_semantics=("parallel",),
            vmem_limit_bytes=32 * 1024 * 1024,
        ),
        cost_estimate=pl.CostEstimate(
            flops=2 * A * M,
            transcendentals=0,
            bytes_accessed=(m_pad * A + m_pad + 128 * A * 128) * itemsize,
        ),
    )(q_slabs, w_sel)

    return out.reshape(m_pad)[:M].reshape(T, B, 1, 1)


def init_vdn_params(num_agents, key):
    # nn.Linear(num_agents, 1, bias=False): weight (1, num_agents),
    # default init U(-1/sqrt(in), 1/sqrt(in)).
    bound = 1.0 / jnp.sqrt(jnp.float32(num_agents))
    return jax.random.uniform(
        key, (1, num_agents), dtype=jnp.float32, minval=-bound, maxval=bound
    )


def _reference(q_i, weight):
    # Exact f32 elementwise reference for nn.Linear(A, 1, bias=False) + unsqueeze(-1).
    w = weight.reshape(-1)
    return jnp.sum(q_i * w, axis=-1)[..., None, None]


if __name__ == "__main__":
    key = jax.random.PRNGKey(0)
    k_q, k_s, k_w, k_q2, k_q3 = jax.random.split(key, 5)

    num_agents = 4
    T, B = 8, 2                      # seq (time) x batch
    state_dim = 16                   # unused by VDN, provided for signature parity

    q_i = jax.random.normal(k_q, (T, B, num_agents), dtype=jnp.float32)
    state = jax.random.normal(k_s, (T, B, state_dim), dtype=jnp.float32)
    weight = init_vdn_params(num_agents, k_w)

    # Tolerance: the in-kernel reduce runs on the MXU; f32 operands may take
    # reduced-precision passes on some generations, so allow a few e-3 of slack.
    # A structural/indexing bug would produce O(1) errors and still be caught.
    tol = dict(atol=2e-2, rtol=2e-2)

    out = jax.block_until_ready(vdn_mixer_forward(q_i, state, weight))
    assert out.shape == (T, B, 1, 1), out.shape
    assert jnp.allclose(out, _reference(q_i, weight), **tol)

    # Ragged M = T*B (not a multiple of 128): exercises the one-time zero-pad path.
    T2, B2 = 40, 17
    q_i2 = jax.random.normal(k_q2, (T2, B2, num_agents), dtype=jnp.float32)
    out2 = jax.block_until_ready(vdn_mixer_forward(q_i2, None, weight))
    assert out2.shape == (T2, B2, 1, 1), out2.shape
    assert jnp.allclose(out2, _reference(q_i2, weight), **tol)

    # Multi-step "parallel" grid with a ragged last block (S = 33 slabs, tile_s = 8).
    T3, B3 = 33, 128
    q_i3 = jax.random.normal(k_q3, (T3, B3, num_agents), dtype=jnp.float32)
    out3 = jax.block_until_ready(
        vdn_mixer_forward(q_i3, None, weight, tile_rows=1024))
    assert out3.shape == (T3, B3, 1, 1), out3.shape
    assert jnp.allclose(out3, _reference(q_i3, weight), **tol)

    print("KERNEL_OK")
</pallas_src>

<mosaic_0001>
module attributes {stable_mosaic.version = 11 : i64} {
  func.func @_vdn_mixer_kernel(%arg0: i32, %arg1: memref<1x512xf32, #tpu.memory_space<vmem>>, %arg2: memref<512x128xf32, #tpu.memory_space<vmem>>, %arg3: memref<1x128xf32, #tpu.memory_space<vmem>>) attributes {dimension_semantics = [#tpu.dimension_semantics<parallel>], iteration_bounds = array<i64: 1>, scalar_prefetch = 0 : i64, scratch_operands = 0 : i64, tpu.core_type = #tpu.core_type<tc>, window_params = [{transform_indices = @transform_0, window_bounds = array<i64: 1, 512>}, {pipeline_mode = #tpu.pipeline_mode<synchronous>, transform_indices = @transform_1, window_bounds = array<i64: 512, 128>}, {transform_indices = @transform_2, window_bounds = array<i64: 1, 128>}]} {
    %c0 = arith.constant 0 : index
    %c0_0 = arith.constant 0 : index
    %0 = vector.load %arg1[%c0, %c0_0] : memref<1x512xf32, #tpu.memory_space<vmem>>, vector<1x512xf32>
    %c0_1 = arith.constant 0 : index
    %c0_2 = arith.constant 0 : index
    %1 = vector.load %arg2[%c0_1, %c0_2] : memref<512x128xf32, #tpu.memory_space<vmem>>, vector<512x128xf32>
    %cst = arith.constant dense<0.000000e+00> : vector<1x128xf32>
    %2 = tpu.matmul %0, %1, %cst {dimension_numbers = #tpu.dot_dimension_numbers<[1], [0], [0], [1], [0, 0, 1, 1], [], []>} : vector<1x512xf32>, vector<512x128xf32>, vector<1x128xf32> -> vector<1x128xf32>
    %c0_3 = arith.constant 0 : index
    %c0_4 = arith.constant 0 : index
    %3 = vector.load %arg3[%c0_3, %c0_4] : memref<1x128xf32, #tpu.memory_space<vmem>>, vector<1x128xf32>
    tpu.vector_store %arg3[%c0_3, %c0_4], %2 {strides = array<i32>} : memref<1x128xf32, #tpu.memory_space<vmem>>, vector<1x128xf32>,
    return
  }
  func.func @transform_0(%arg0: i32) -> (i32, i32) {
    %c0_i32 = arith.constant 0 : i32
    %c0_i32_0 = arith.constant 0 : i32
    return %arg0, %c0_i32 : i32, i32
  }
  func.func @transform_1(%arg0: i32) -> (i32, i32) {
    %c0_i32 = arith.constant 0 : i32
    %c0_i32_0 = arith.constant 0 : i32
    %c0_i32_1 = arith.constant 0 : i32
    return %c0_i32, %c0_i32_0 : i32, i32
  }
  func.func @transform_2(%arg0: i32) -> (i32, i32) {
    %c0_i32 = arith.constant 0 : i32
    %c0_i32_0 = arith.constant 0 : i32
    return %arg0, %c0_i32 : i32, i32
  }
}

</mosaic_0001>

<llo_original>
// kernel: vdn_mixer_forward.1
$region0: #{vdn_mixer_forward.1}
  #allocation0 [shape = 'u32[]', space=smem, size = 0x4, offset = 0x4, fixed_abs, tag = 'smem constant byte address 0x4 - core index']
  #allocation1 [shape = 'u32[72,128]{1,0:T(1,128)}', space=vmem, size = 0x9000, scoped, tag = 'internal scratch']
  %s0 = inlined_call_operand.vmem [shape: f32[1,512], index: 0, kind: input, shape index: {}]
  %s1 = inlined_call_operand.vmem [shape: f32[512,128], index: 1, kind: input, shape index: {}]
  %s2 = inlined_call_operand.vmem [shape: f32[1,128], index: 2, kind: output, shape index: {}]
  %s3 = sld [smem:[#allocation0]]
  $region18: #{vdn_mixer_forward.1} parent=0
    _
  %s5 = ssub.s32 1, %s3
  %s6 = scalar_select 0, %s5, %s3
  // Predicated region
  $region2: #{vdn_mixer_forward.1} parent=0 // pred_check
    _
  $region3: #{vdn_mixer_forward.1} parent=0 // pred_check_branch
    %8 = sbr.rel (0) target = $region5
  $region4: #{vdn_mixer_forward.1} parent=0 // pred_region
    _
  $region5: #{vdn_mixer_forward.1} parent=0 // pred_fallthru
    _
  // Predicated region
  $region6: #{vdn_mixer_forward.1} parent=0 // pred_check
    _
  $region7: #{vdn_mixer_forward.1} parent=0 // pred_check_branch
    %10 = sbr.rel (0) target = $region9
  $region8: #{vdn_mixer_forward.1} parent=0 // pred_region
    _
  $region9: #{vdn_mixer_forward.1} parent=0 // pred_fallthru
    _
  %v11 = vld [vmem:[%s0] sm:$0xf]
  %v12 = vld [vmem:[%s1] sm:$0xff]
  %v13 = vld [vmem:[%s1 + $0x8] sm:$0xff]
  %v14 = vld [vmem:[%s1 + $0x10] sm:$0xff]
  %v15 = vld [vmem:[%s1 + $0x18] sm:$0xff]
  %v16 = vld [vmem:[%s1 + $0x20] sm:$0xff]
  %v17 = vld [vmem:[%s1 + $0x28] sm:$0xff]
  %v18 = vld [vmem:[%s1 + $0x30] sm:$0xff]
  %v19 = vld [vmem:[%s1 + $0x38] sm:$0xff]
  %v20 = vld [vmem:[%s1 + $0x40] sm:$0xff]
  %v21 = vld [vmem:[%s1 + $0x48] sm:$0xff]
  %v22 = vld [vmem:[%s1 + $0x50] sm:$0xff]
  %v23 = vld [vmem:[%s1 + $0x58] sm:$0xff]
  %v24 = vld [vmem:[%s1 + $0x60] sm:$0xff]
  %v25 = vld [vmem:[%s1 + $0x68] sm:$0xff]
  %v26 = vld [vmem:[%s1 + $0x70] sm:$0xff]
  %v27 = vld [vmem:[%s1 + $0x78] sm:$0xff]
  %v28 = vld [vmem:[%s1 + $0x80] sm:$0xff]
  %v29 = vld [vmem:[%s1 + $0x88] sm:$0xff]
  %v30 = vld [vmem:[%s1 + $0x90] sm:$0xff]
  %v31 = vld [vmem:[%s1 + $0x98] sm:$0xff]
  %v32 = vld [vmem:[%s1 + $0xa0] sm:$0xff]
  %v33 = vld [vmem:[%s1 + $0xa8] sm:$0xff]
  %v34 = vld [vmem:[%s1 + $0xb0] sm:$0xff]
  %v35 = vld [vmem:[%s1 + $0xb8] sm:$0xff]
  %v36 = vld [vmem:[%s1 + $0xc0] sm:$0xff]
  %v37 = vld [vmem:[%s1 + $0xc8] sm:$0xff]
  %v38 = vld [vmem:[%s1 + $0xd0] sm:$0xff]
  %v39 = vld [vmem:[%s1 + $0xd8] sm:$0xff]
  %v40 = vld [vmem:[%s1 + $0xe0] sm:$0xff]
  %v41 = vld [vmem:[%s1 + $0xe8] sm:$0xff]
  %v42 = vld [vmem:[%s1 + $0xf0] sm:$0xff]
  %v43 = vld [vmem:[%s1 + $0xf8] sm:$0xff]
  %v44 = vld [vmem:[%s1 + $0x100] sm:$0xff]
  %v45 = vld [vmem:[%s1 + $0x108] sm:$0xff]
  %v46 = vld [vmem:[%s1 + $0x110] sm:$0xff]
  %v47 = vld [vmem:[%s1 + $0x118] sm:$0xff]
  %v48 = vld [vmem:[%s1 + $0x120] sm:$0xff]
  %v49 = vld [vmem:[%s1 + $0x128] sm:$0xff]
  %v50 = vld [vmem:[%s1 + $0x130] sm:$0xff]
  %v51 = vld [vmem:[%s1 + $0x138] sm:$0xff]
  %v52 = vld [vmem:[%s1 + $0x140] sm:$0xff]
  %v53 = vld [vmem:[%s1 + $0x148] sm:$0xff]
  %v54 = vld [vmem:[%s1 + $0x150] sm:$0xff]
  %v55 = vld [vmem:[%s1 + $0x158] sm:$0xff]
  %v56 = vld [vmem:[%s1 + $0x160] sm:$0xff]
  %v57 = vld [vmem:[%s1 + $0x168] sm:$0xff]
  %v58 = vld [vmem:[%s1 + $0x170] sm:$0xff]
  %v59 = vld [vmem:[%s1 + $0x178] sm:$0xff]
  %v60 = vld [vmem:[%s1 + $0x180] sm:$0xff]
  %v61 = vld [vmem:[%s1 + $0x188] sm:$0xff]
  %v62 = vld [vmem:[%s1 + $0x190] sm:$0xff]
  %v63 = vld [vmem:[%s1 + $0x198] sm:$0xff]
  %v64 = vld [vmem:[%s1 + $0x1a0] sm:$0xff]
  %v65 = vld [vmem:[%s1 + $0x1a8] sm:$0xff]
  %v66 = vld [vmem:[%s1 + $0x1b0] sm:$0xff]
  %v67 = vld [vmem:[%s1 + $0x1b8] sm:$0xff]
  %v68 = vld [vmem:[%s1 + $0x1c0] sm:$0xff]
  %v69 = vld [vmem:[%s1 + $0x1c8] sm:$0xff]
  %v70 = vld [vmem:[%s1 + $0x1d0] sm:$0xff]
  %v71 = vld [vmem:[%s1 + $0x1d8] sm:$0xff]
  %v72 = vld [vmem:[%s1 + $0x1e0] sm:$0xff]
  %v73 = vld [vmem:[%s1 + $0x1e8] sm:$0xff]
  %v74 = vld [vmem:[%s1 + $0x1f0] sm:$0xff]
  %v75 = vld [vmem:[%s1 + $0x1f8] sm:$0xff]
  %v77 = vperm.slane %v11, 0
  %v78 = vperm.slane %v11, 1
  %v79 = vperm.slane %v11, 2
  %v80 = vperm.slane %v11, 3
  %85 = vmatpush.msra.mxu0 %v27
  %86 = vmatpush.msra.mxu0 %v26
  %87 = vmatpush.msra.mxu0 %v25
  %88 = vmatpush.msra.mxu0 %v24
  %89 = vmatpush.msra.mxu0 %v23
  %90 = vmatpush.msra.mxu0 %v22
  %91 = vmatpush.msra.mxu0 %v21
  %92 = vmatpush.msra.mxu0 %v20
  %93 = vmatpush.msra.mxu0 %v19
  %94 = vmatpush.msra.mxu0 %v18
  %95 = vmatpush.msra.mxu0 %v17
  %96 = vmatpush.msra.mxu0 %v16
  %97 = vmatpush.msra.mxu0 %v15
  %98 = vmatpush.msra.mxu0 %v14
  %99 = vmatpush.msra.mxu0 %v13
  %100 = vmatpush.msra.mxu0 %v12
  %101 = vmatmul.f32.gmra.mxu0 %v77
  %v102 = vpop.f32.mrf.mxu0
  %v103 = vadd.f32 0.0, %v102
  %104 = vdwg.mxu0
  %105 = vmatpush.msra.mxu0 %v43
  %106 = vmatpush.msra.mxu0 %v42
  %107 = vmatpush.msra.mxu0 %v41
  %108 = vmatpush.msra.mxu0 %v40
  %109 = vmatpush.msra.mxu0 %v39
  %110 = vmatpush.msra.mxu0 %v38
  %111 = vmatpush.msra.mxu0 %v37
  %112 = vmatpush.msra.mxu0 %v36
  %113 = vmatpush.msra.mxu0 %v35
  %114 = vmatpush.msra.mxu0 %v34
  %115 = vmatpush.msra.mxu0 %v33
  %116 = vmatpush.msra.mxu0 %v32
  %117 = vmatpush.msra.mxu0 %v31
  %118 = vmatpush.msra.mxu0 %v30
  %119 = vmatpush.msra.mxu0 %v29
  %120 = vmatpush.msra.mxu0 %v28
  %121 = vmatmul.f32.gmra.mxu0 %v78
  %v122 = vpop.f32.mrf.mxu0
  %v123 = vadd.f32 %v103, %v122
  %124 = vdwg.mxu0
  %125 = vmatpush.msra.mxu0 %v59
  %126 = vmatpush.msra.mxu0 %v58
  %127 = vmatpush.msra.mxu0 %v57
  %128 = vmatpush.msra.mxu0 %v56
  %129 = vmatpush.msra.mxu0 %v55
  %130 = vmatpush.msra.mxu0 %v54
  %131 = vmatpush.msra.mxu0 %v53
  %132 = vmatpush.msra.mxu0 %v52
  %133 = vmatpush.msra.mxu0 %v51
  %134 = vmatpush.msra.mxu0 %v50
  %135 = vmatpush.msra.mxu0 %v49
  %136 = vmatpush.msra.mxu0 %v48
  %137 = vmatpush.msra.mxu0 %v47
  %138 = vmatpush.msra.mxu0 %v46
  %139 = vmatpush.msra.mxu0 %v45
  %140 = vmatpush.msra.mxu0 %v44
  %141 = vmatmul.f32.gmra.mxu0 %v79
  %v142 = vpop.f32.mrf.mxu0
  %v143 = vadd.f32 %v123, %v142
  %144 = vdwg.mxu0
  %145 = vmatpush.msra.mxu0 %v75
  %146 = vmatpush.msra.mxu0 %v74
  %147 = vmatpush.msra.mxu0 %v73
  %148 = vmatpush.msra.mxu0 %v72
  %149 = vmatpush.msra.mxu0 %v71
  %150 = vmatpush.msra.mxu0 %v70
  %151 = vmatpush.msra.mxu0 %v69
  %152 = vmatpush.msra.mxu0 %v68
  %153 = vmatpush.msra.mxu0 %v67
  %154 = vmatpush.msra.mxu0 %v66
  %155 = vmatpush.msra.mxu0 %v65
  %156 = vmatpush.msra.mxu0 %v64
  %157 = vmatpush.msra.mxu0 %v63
  %158 = vmatpush.msra.mxu0 %v62
  %159 = vmatpush.msra.mxu0 %v61
  %160 = vmatpush.msra.mxu0 %v60
  %161 = vmatmul.f32.gmra.mxu0 %v80
  %v162 = vpop.f32.mrf.mxu0
  %v163 = vadd.f32 %v143, %v162
  %164 = vdwg.mxu0
  %165 = vst [vmem:[%s2] sm:$0x1] %v163
  // Predicated region
  $region10: #{vdn_mixer_forward.1} parent=0 // pred_check
    _
  $region11: #{vdn_mixer_forward.1} parent=0 // pred_check_branch
    %167 = sbr.rel (0) target = $region13
  $region12: #{vdn_mixer_forward.1} parent=0 // pred_region
    _
  $region13: #{vdn_mixer_forward.1} parent=0 // pred_fallthru
    _
  // Predicated region
  $region14: #{vdn_mixer_forward.1} parent=0 // pred_check
    _
  $region15: #{vdn_mixer_forward.1} parent=0 // pred_check_branch
    %169 = sbr.rel (0) target = $region17
  $region16: #{vdn_mixer_forward.1} parent=0 // pred_region
    _
  $region17: #{vdn_mixer_forward.1} parent=0 // pred_fallthru
    _

</llo_original>
